<compile_context>
chip_gen: v7x
topology: tpu7x:2x2x1
jax: 0.10.0
libtpu: 0.0.40
codegen_flags: <defaults>
</compile_context>

<pallas_src>
import jax
import jax.numpy as jnp
from jax.experimental import pallas as pl
from jax.experimental.pallas import tpu as pltpu

_MAX_TILE_LANES = 2048  # 512-2048-lane tiles reach ~85% of the HBM roofline


# -----------------------------------------------------------------------------
# SE layer: XLA prologue (squeeze + excitation) + Pallas broadcast-scale kernel.
# -----------------------------------------------------------------------------

def _se_scale_kernel(e_ref, x_ref, o_ref):
    # e_ref: (1, C, 1) per-(batch, channel) gate.  x_ref / o_ref: (1, C, T_HW).
    # Pure VPU broadcast-multiply in the input dtype (no fp32 tile copy).
    o_ref[...] = (x_ref[...] * e_ref[...]).astype(o_ref.dtype)


def _pick_hw_tile(hw_pad, max_lanes=_MAX_TILE_LANES):
    """Largest multiple of 128 that divides hw_pad and is <= max_lanes."""
    n = hw_pad // 128
    for k in range(max(1, min(n, max_lanes // 128)), 0, -1):
        if n % k == 0:
            return 128 * k
    return 128


def se_layer(x, w1, w2):
    """SELayer forward.  x: (B, C, H, W) NCHW.
    w1: (C//r, C), w2: (C, C//r) in PyTorch nn.Linear (out, in) layout."""
    B, C, H, W = x.shape
    HW = H * W

    # ---- Phase 1: squeeze + excitation for the whole batch (tiny; XLA). ----
    pooled = jnp.mean(x.astype(jnp.float32), axis=(2, 3))              # (B, C)
    h = jnp.maximum(pooled @ w1.astype(jnp.float32).T, 0.0)            # (B, C//r)
    e = jax.nn.sigmoid(h @ w2.astype(jnp.float32).T)                   # (B, C)
    e3 = e.astype(x.dtype)[:, :, None]                                 # (B, C, 1)

    # ---- Phase 2: lane-dense tiled broadcast multiply (Pallas). ----
    hw_pad = ((HW + 127) // 128) * 128
    t_hw = _pick_hw_tile(hw_pad)
    n_t = hw_pad // t_hw

    x_flat = x.reshape(B, C, HW)
    if hw_pad != HW:
        # The pool above used the true HW, so zero padding cannot bias it.
        x_flat = jnp.pad(x_flat, ((0, 0), (0, 0), (0, hw_pad - HW)))

    block_bytes = C * t_hw * x.dtype.itemsize
    vmem_limit = int(min(max(8 * block_bytes, 16 << 20), 48 << 20))

    out_flat = pl.pallas_call(
        _se_scale_kernel,
        out_shape=jax.ShapeDtypeStruct((B, C, hw_pad), x.dtype),
        grid_spec=pltpu.PrefetchScalarGridSpec(
            num_scalar_prefetch=0,
            grid=(B, n_t),
            in_specs=[
                pl.BlockSpec((1, C, 1), lambda b, t: (b, 0, 0)),      # gate e
                pl.BlockSpec((1, C, t_hw), lambda b, t: (b, 0, t)),   # x tile
            ],
            out_specs=pl.BlockSpec((1, C, t_hw), lambda b, t: (b, 0, t)),
        ),
        input_output_aliases={1: 0},  # write the scaled tile in place over x_flat
        compiler_params=pltpu.CompilerParams(
            dimension_semantics=("parallel", "parallel"),
            vmem_limit_bytes=vmem_limit),
    )(e3, x_flat)

    return out_flat[:, :, :HW].reshape(B, C, H, W)


def se_layer_ref(x, w1, w2):
    """Pure-JAX reference of SELayer.forward."""
    pooled = jnp.mean(x, axis=(2, 3))
    h = jax.nn.relu(pooled @ w1.T)
    e = jax.nn.sigmoid(h @ w2.T)
    return x * e[:, :, None, None]


# -----------------------------------------------------------------------------
# Full SemanticEmbeddModuleWithSE forward.
# -----------------------------------------------------------------------------

def _conv3x3(x, w, b):
    out = jax.lax.conv_general_dilated(
        x, w, window_strides=(1, 1), padding=((1, 1), (1, 1)),
        dimension_numbers=("NCHW", "OIHW", "NCHW"))
    return out + b[None, :, None, None]


def semantic_embedd_forward(x, segmap, params, use_pallas_se=True):
    """SemanticEmbeddModuleWithSE.forward.
    x: (B, norm_nc, H, W), segmap: (B, label_nc, h, w).
    BatchNorm2d uses training-mode batch statistics (fresh module: weight=1, bias=0)."""
    eps = 1e-5
    _, _, H, W = x.shape

    # param_free_norm: InstanceNorm2d(affine=False)
    mu = jnp.mean(x, axis=(2, 3), keepdims=True)
    var = jnp.var(x, axis=(2, 3), keepdims=True)
    normalized = (x - mu) * jax.lax.rsqrt(var + eps)

    # TODO(synk): bilinear resize, 3x3 convs and the norm statistics stay as
    # plain XLA ops; only the SE layer is a hand-written Pallas kernel.
    seg = jax.image.resize(segmap, (segmap.shape[0], segmap.shape[1], H, W),
                           method="bilinear", antialias=False)

    actv = jax.nn.relu(_conv3x3(seg, params["w_shared"], params["b_shared"]))

    if use_pallas_se:
        actv = se_layer(actv, params["w_fc1"], params["w_fc2"])
    else:
        actv = se_layer_ref(actv, params["w_fc1"], params["w_fc2"])

    gamma = jax.nn.sigmoid(_conv3x3(actv, params["w_gamma"], params["b_gamma"]))
    beta = _conv3x3(actv, params["w_beta"], params["b_beta"])

    y = normalized * (1.0 + gamma)
    bmu = jnp.mean(y, axis=(0, 2, 3), keepdims=True)
    bvar = jnp.var(y, axis=(0, 2, 3), keepdims=True)
    return (y - bmu) * jax.lax.rsqrt(bvar + eps) + beta


def _forward_pallas(x, segmap, params):
    return semantic_embedd_forward(x, segmap, params, use_pallas_se=True)


def _se_layer_call(x, w1, w2):
    return se_layer(x, w1, w2)


if __name__ == "__main__":
    B, norm_nc, label_nc, nhidden, se_red = 2, 16, 4, 32, 16
    H = W = 16
    hs = ws = 8
    hidden = nhidden // se_red

    key = jax.random.PRNGKey(0)
    ks = jax.random.split(key, 10)
    x = jax.random.normal(ks[0], (B, norm_nc, H, W), dtype=jnp.float32)
    segmap = jax.random.normal(ks[1], (B, label_nc, hs, ws), dtype=jnp.float32)

    params = {
        "w_shared": jax.random.normal(ks[2], (nhidden, label_nc, 3, 3), jnp.float32) * 0.1,
        "b_shared": jax.random.normal(ks[3], (nhidden,), jnp.float32) * 0.01,
        "w_fc1":    jax.random.normal(ks[4], (hidden, nhidden), jnp.float32) * 0.1,
        "w_fc2":    jax.random.normal(ks[5], (nhidden, hidden), jnp.float32) * 0.1,
        "w_gamma":  jax.random.normal(ks[6], (norm_nc, nhidden, 3, 3), jnp.float32) * 0.1,
        "b_gamma":  jax.random.normal(ks[7], (norm_nc,), jnp.float32) * 0.01,
        "w_beta":   jax.random.normal(ks[8], (norm_nc, nhidden, 3, 3), jnp.float32) * 0.1,
        "b_beta":   jax.random.normal(ks[9], (norm_nc,), jnp.float32) * 0.01,
    }

    # 1) Standalone SE kernel vs pure-JAX reference.
    se_in = jax.random.normal(jax.random.PRNGKey(1), (B, nhidden, H, W), jnp.float32)
    se_out = jax.block_until_ready(
        jax.jit(_se_layer_call)(se_in, params["w_fc1"], params["w_fc2"]))
    se_ref = se_layer_ref(se_in, params["w_fc1"], params["w_fc2"])
    assert se_out.shape == se_in.shape
    assert jnp.allclose(se_out, se_ref, atol=1e-5, rtol=1e-5), "SE kernel mismatch"

    # 2) Full module forward (Pallas SE inside) vs pure-JAX reference.
    out = jax.block_until_ready(jax.jit(_forward_pallas)(x, segmap, params))
    ref = semantic_embedd_forward(x, segmap, params, use_pallas_se=False)
    assert out.shape == (B, norm_nc, H, W)
    assert jnp.allclose(out, ref, atol=1e-4, rtol=1e-4), "module forward mismatch"

    print("KERNEL_OK")
</pallas_src>

<mosaic_0001>
module attributes {stable_mosaic.version = 11 : i64} {
  func.func @_se_scale_kernel(%arg0: i32, %arg1: i32, %arg2: memref<1x32x1xf32, #tpu.memory_space<vmem>>, %arg3: memref<1x32x256xf32, #tpu.memory_space<vmem>>, %arg4: memref<1x32x256xf32, #tpu.memory_space<vmem>>) attributes {dimension_semantics = [#tpu.dimension_semantics<parallel>, #tpu.dimension_semantics<parallel>], iteration_bounds = array<i64: 2, 1>, scalar_prefetch = 0 : i64, scratch_operands = 0 : i64, tpu.core_type = #tpu.core_type<tc>, window_params = [{transform_indices = @transform_0, window_bounds = array<i64: 1, 32, 1>}, {transform_indices = @transform_1, window_bounds = array<i64: 1, 32, 256>}, {transform_indices = @transform_2, window_bounds = array<i64: 1, 32, 256>}]} {
    %c0 = arith.constant 0 : index
    %c0_0 = arith.constant 0 : index
    %c0_1 = arith.constant 0 : index
    %0 = vector.load %arg3[%c0, %c0_0, %c0_1] : memref<1x32x256xf32, #tpu.memory_space<vmem>>, vector<1x32x256xf32>
    %c0_2 = arith.constant 0 : index
    %c0_3 = arith.constant 0 : index
    %c0_4 = arith.constant 0 : index
    %1 = vector.load %arg2[%c0_2, %c0_3, %c0_4] : memref<1x32x1xf32, #tpu.memory_space<vmem>>, vector<1x32x1xf32>
    %2 = vector.broadcast %1 : vector<1x32x1xf32> to vector<1x32x256xf32>
    %3 = arith.mulf %0, %2 : vector<1x32x256xf32>
    %c0_5 = arith.constant 0 : index
    %c0_6 = arith.constant 0 : index
    %c0_7 = arith.constant 0 : index
    %4 = vector.load %arg4[%c0_5, %c0_6, %c0_7] : memref<1x32x256xf32, #tpu.memory_space<vmem>>, vector<1x32x256xf32>
    tpu.vector_store %arg4[%c0_5, %c0_6, %c0_7], %3 {strides = array<i32>} : memref<1x32x256xf32, #tpu.memory_space<vmem>>, vector<1x32x256xf32>,
    return
  }
  func.func @transform_0(%arg0: i32, %arg1: i32) -> (i32, i32, i32) {
    %c0_i32 = arith.constant 0 : i32
    %c0_i32_0 = arith.constant 0 : i32
    %c0_i32_1 = arith.constant 0 : i32
    return %arg0, %c0_i32, %c0_i32_0 : i32, i32, i32
  }
  func.func @transform_1(%arg0: i32, %arg1: i32) -> (i32, i32, i32) {
    %c0_i32 = arith.constant 0 : i32
    %c0_i32_0 = arith.constant 0 : i32
    return %arg0, %c0_i32, %arg1 : i32, i32, i32
  }
  func.func @transform_2(%arg0: i32, %arg1: i32) -> (i32, i32, i32) {
    %c0_i32 = arith.constant 0 : i32
    %c0_i32_0 = arith.constant 0 : i32
    return %arg0, %c0_i32, %arg1 : i32, i32, i32
  }
}

</mosaic_0001>

<llo_original>
// kernel: _se_layer_call.1
$region0: #{_se_layer_call.1}
  #allocation0 [shape = 'u32[]', space=smem, size = 0x4, offset = 0x4, fixed_abs, tag = 'smem constant byte address 0x4 - core index']
  #allocation1 [shape = 'u32[144,128]{1,0:T(1,128)}', space=vmem, size = 0x12000, scoped, tag = 'internal scratch']
  %s0 = inlined_call_operand.vmem [shape: f32[2,32,1], index: 0, kind: input, shape index: {}]
  %s1 = inlined_call_operand.vmem [shape: f32[2,32,256], index: 1, kind: input, shape index: {}, may-alias: {1,2}]
  %s2 = inlined_call_operand.vmem [shape: f32[2,32,256], index: 2, kind: output, shape index: {}, may-alias: {1,2}]
  %s3 = sld [smem:[#allocation0]]
  $region41: #{_se_layer_call.1} parent=0
    _
  %s5 = ssub.s32 1, %s3
  %s6 = scalar_select 0, %s5, %s3
  loop: start=0, step=1, limit=4
  $region2: #{_se_layer_call.1} parent=0 // loop_pre_header
    _
  $region3: #{_se_layer_call.1} parent=0 // loop_header
    %s8 = sphi 0, %s12
    %p9 = scmp.ge.s32.totalorder %s8, 4
    %s15 = sphi 0, %s27
    %s16 = sphi 0, %s23
    %s17 = sphi 0, %s15
    %s18 = sphi 0, %s16
    %s19 = sphi 0, %s17
    %s20 = sphi 0, %s18
    %s30 = sphi 0, %s32
    %s33 = sphi 0, %s30
    %s34 = sphi 0, %s33
    %s50 = sphi 0, %s34
    %s58 = sphi 0, %s60
    %s61 = sphi 0, %s58
    %s62 = sphi 0, %s61
    %s78 = sphi 0, %s62
    %s86 = sphi 0, %s88
    %s89 = sphi 0, %s86
    %s90 = sphi 0, %s89
    %s106 = sphi 0, %s90
  $region4: #{_se_layer_call.1} parent=0 // loop_header_branch
    %11 = sbr.rel (%p9) target = $region8
  $region5: #{_se_layer_call.1} parent=0 // loop_body
    %s13 = ssub.s32 %s8, 1
    %s14 = ssub.s32 %s8, 2
    %s21 = sadd.s32 1, %s16
    %p22 = scmp.ge.s32.totalorder %s21, 1
    %s23 = scalar_select %p22, 0, %s21
    %s24 = sadd.s32 1, %s15
    %s25 = scalar_select %p22, %s24, %s15
    %p26 = scmp.ge.s32.totalorder %s25, 2
    %s27 = scalar_select %p26, 0, %s25
    %s28 = ssub.s32 %s15, %s27
    %p29 = scmp.eq.s32.totalorder %s28, 0
    %s31 = sadd.s32 %s30, 1
    %s32 = scalar_select %p29, %s30, %s31
    %p35 = pneg %p29
    %p36 = scmp.eq.s32.totalorder %s8, 1
    %p37 = por %p35, %p36
    %p38 = scmp.ne.s32.totalorder %s30, %s33
    %p39 = scmp.eq.s32.totalorder %s8, 0
    %p40 = por %p38, %p39
    %p41 = scmp.ne.s32.totalorder %s30, %s33
    %p42 = scmp.eq.s32.totalorder %s13, 1
    %p43 = por %p41, %p42
    %p44 = scmp.ne.s32.totalorder %s33, %s34
    %p45 = scmp.eq.s32.totalorder %s13, 0
    %p46 = por %p44, %p45
    %p47 = scmp.ne.s32.totalorder %s33, %s34
    %p48 = scmp.eq.s32.totalorder %s14, 1
    %p49 = por %p47, %p48
    %p51 = scmp.ne.s32.totalorder %s34, %s50
    %p52 = scmp.eq.s32.totalorder %s14, 0
    %p53 = por %p51, %p52
    %s54 = ssub.s32 %s15, %s27
    %s55 = ssub.s32 %s16, %s23
    %s56 = sor.u32 %s54, %s55
    %p57 = scmp.eq.s32.totalorder %s56, 0
    %s59 = sadd.s32 %s58, 1
    %s60 = scalar_select %p57, %s58, %s59
    %p63 = pneg %p57
    %p64 = scmp.eq.s32.totalorder %s8, 1
    %p65 = por %p63, %p64
    %p66 = scmp.ne.s32.totalorder %s58, %s61
    %p67 = scmp.eq.s32.totalorder %s8, 0
    %p68 = por %p66, %p67
    %p69 = scmp.ne.s32.totalorder %s58, %s61
    %p70 = scmp.eq.s32.totalorder %s13, 1
    %p71 = por %p69, %p70
    %p72 = scmp.ne.s32.totalorder %s61, %s62
    %p73 = scmp.eq.s32.totalorder %s13, 0
    %p74 = por %p72, %p73
    %p75 = scmp.ne.s32.totalorder %s61, %s62
    %p76 = scmp.eq.s32.totalorder %s14, 1
    %p77 = por %p75, %p76
    %p79 = scmp.ne.s32.totalorder %s62, %s78
    %p80 = scmp.eq.s32.totalorder %s14, 0
    %p81 = por %p79, %p80
    %s82 = ssub.s32 %s15, %s27
    %s83 = ssub.s32 %s16, %s23
    %s84 = sor.u32 %s82, %s83
    %p85 = scmp.eq.s32.totalorder %s84, 0
    %s87 = sadd.s32 %s86, 1
    %s88 = scalar_select %p85, %s86, %s87
    %p91 = pneg %p85
    %p92 = scmp.eq.s32.totalorder %s8, 1
    %p93 = por %p91, %p92
    %p94 = scmp.ne.s32.totalorder %s86, %s89
    %p95 = scmp.eq.s32.totalorder %s8, 0
    %p96 = por %p94, %p95
    %p97 = scmp.ne.s32.totalorder %s86, %s89
    %p98 = scmp.eq.s32.totalorder %s13, 1
    %p99 = por %p97, %p98
    %p100 = scmp.ne.s32.totalorder %s89, %s90
    %p101 = scmp.eq.s32.totalorder %s13, 0
    %p102 = por %p100, %p101
    %p103 = scmp.ne.s32.totalorder %s89, %s90
    %p104 = scmp.eq.s32.totalorder %s14, 1
    %p105 = por %p103, %p104
    %p107 = scmp.ne.s32.totalorder %s90, %s106
    %p108 = scmp.eq.s32.totalorder %s14, 0
    %p109 = por %p107, %p108
    %p110 = scmp.le.s32.totalorder 1, %s8
    %p111 = scmp.lt.s32.totalorder %s8, 3
    %p112 = pnand %p110, %p111
    %p113 = pneg %p112
    // Predicated region
    $region9: #{_se_layer_call.1} parent=5 // pred_check
      _
    $region10: #{_se_layer_call.1} parent=5 // pred_check_branch
      %115 = sbr.rel (%p112) target = $region12
    $region11: #{_se_layer_call.1} parent=5 // pred_region
      %s116 = ssub.s32 %s8, 1
    $region12: #{_se_layer_call.1} parent=5 // pred_fallthru
      _
    %p117 = scmp.lt.s32.totalorder %s8, 2
    // Predicated region
    $region13: #{_se_layer_call.1} parent=5 // pred_check
      %p118 = pneg %p117
    $region14: #{_se_layer_call.1} parent=5 // pred_check_branch
      %120 = sbr.rel (%p118) target = $region16
    $region15: #{_se_layer_call.1} parent=5 // pred_region
      // Predicated region
      $region17: #{_se_layer_call.1} parent=15 // pred_check
        %p121 = pneg %p40
      $region18: #{_se_layer_call.1} parent=15 // pred_check_branch
        %123 = sbr.rel (%p121) target = $region20
      $region19: #{_se_layer_call.1} parent=15 // pred_region
        %p124 = scmp.lt.s32.totalorder %s15, 1
        %s125 = scalar_select %p124, %s15, 1
        %s126 = smul.addr %s125, 4
        %s127 = smul.addr %s126, 8
        %s128 = scalar_lea.vmem %s0, %s127
      $region20: #{_se_layer_call.1} parent=15 // pred_fallthru
        _
      // Predicated region
      $region21: #{_se_layer_call.1} parent=15 // pred_check
        %p129 = pneg %p68
      $region22: #{_se_layer_call.1} parent=15 // pred_check_branch
        %131 = sbr.rel (%p129) target = $region24
      $region23: #{_se_layer_call.1} parent=15 // pred_region
        %s132 = smul.u32 2, %s16
        %p133 = scmp.lt.s32.totalorder %s15, 1
        %s134 = scalar_select %p133, %s15, 1
        %p135 = scmp.lt.s32.totalorder %s132, 1
        %s136 = scalar_select %p135, %s132, 1
        %s137 = smul.addr %s134, 8
        %s138 = sadd.s32 %s136, %s137
        %s139 = smul.addr %s138, 8
        %s140 = scalar_lea.vmem %s1, %s139
        %s141 = smul.u32 2, %s16
      $region24: #{_se_layer_call.1} parent=15 // pred_fallthru
        _
    $region16: #{_se_layer_call.1} parent=5 // pred_fallthru
      _
    %p142 = scmp.le.s32.totalorder 1, %s8
    %p143 = scmp.lt.s32.totalorder %s8, 3
    %p144 = pnand %p142, %p143
    %p145 = pneg %p144
    // Predicated region
    $region25: #{_se_layer_call.1} parent=5 // pred_check
      _
    $region26: #{_se_layer_call.1} parent=5 // pred_check_branch
      %147 = sbr.rel (%p144) target = $region28
    $region27: #{_se_layer_call.1} parent=5 // pred_region
      %s148 = ssub.s32 %s8, 1
      %p149 = scmp.lt.s32.totalorder %s17, 1
      %s150 = scalar_select %p149, %s17, 1
      %s151 = smul.addr %s150, 4
      %s152 = smul.addr %s151, 8
      %s153 = scalar_lea.vmem %s0, %s152
      %p154 = pneg %p46
      %p155 = pneg %p43
      %s156 = smul.u32 2, %s18
      %p157 = scmp.lt.s32.totalorder %s17, 1
      %s158 = scalar_select %p157, %s17, 1
      %p159 = scmp.lt.s32.totalorder %s156, 1
      %s160 = scalar_select %p159, %s156, 1
      %s161 = smul.addr %s158, 8
      %s162 = sadd.s32 %s160, %s161
      %s163 = smul.addr %s162, 8
      %s164 = scalar_lea.vmem %s1, %s163
      %p165 = pneg %p74
      %p166 = pneg %p71
      %p167 = pneg %p102
      %p168 = pneg %p99
      %s169 = smul.u32 2, %s18
      %p170 = scmp.lt.s32.totalorder %s17, 1
      %s171 = scalar_select %p170, %s17, 1
      %p172 = scmp.lt.s32.totalorder %s169, 1
      %s173 = scalar_select %p172, %s169, 1
      %s174 = smul.addr %s171, 8
      %s175 = sadd.s32 %s173, %s174
      %s176 = smul.addr %s175, 8
      %s177 = scalar_lea.vmem %s2, %s176
      %p178 = scmp.lt.s32.totalorder %s17, 1
      %s179 = scalar_select %p178, %s17, 1
      %s180 = smul.addr %s179, 4
      %s181 = smul.addr %s180, 8
      %s182 = scalar_lea.vmem %s0, %s181
      %s183 = smul.u32 2, %s18
      %p184 = scmp.lt.s32.totalorder %s17, 1
      %s185 = scalar_select %p184, %s17, 1
      %p186 = scmp.lt.s32.totalorder %s183, 1
      %s187 = scalar_select %p186, %s183, 1
      %s188 = smul.addr %s185, 8
      %s189 = sadd.s32 %s187, %s188
      %s190 = smul.addr %s189, 8
      %s191 = scalar_lea.vmem %s1, %s190
      %s192 = smul.u32 2, %s18
      %s193 = smul.u32 2, %s18
      %p194 = scmp.lt.s32.totalorder %s17, 1
      %s195 = scalar_select %p194, %s17, 1
      %p196 = scmp.lt.s32.totalorder %s193, 1
      %s197 = scalar_select %p196, %s193, 1
      %s198 = smul.addr %s195, 8
      %s199 = sadd.s32 %s197, %s198
      %s200 = smul.addr %s199, 8
      %s201 = scalar_lea.vmem %s2, %s200
      %s202 = smul.u32 2, %s18
      %v203 = vld [vmem:[%s191] sm:$0xff]
      %v204 = vld [vmem:[%s191 + $0x8] sm:$0xff]
      %v205 = vld [vmem:[%s191 + $0x10] sm:$0xff]
      %v206 = vld [vmem:[%s191 + $0x18] sm:$0xff]
      %v207 = vld [vmem:[%s191 + $0x20] sm:$0xff]
      %v208 = vld [vmem:[%s191 + $0x28] sm:$0xff]
      %v209 = vld [vmem:[%s191 + $0x30] sm:$0xff]
      %v210 = vld [vmem:[%s191 + $0x38] sm:$0xff]
      %v211 = vld [vmem:[%s182] sm:$0xff]
      %v212 = vld [vmem:[%s182 + $0x8] sm:$0xff]
      %v213 = vld [vmem:[%s182 + $0x10] sm:$0xff]
      %v214 = vld [vmem:[%s182 + $0x18] sm:$0xff]
      %216 = vset.pattern.permute.xlu0 0
      %217 = vperm.xlu0 %216, %v211
      %v218 = vpop.permute.xlu0 %217
      %221 = vset.pattern.permute.xlu0 0
      %222 = vperm.xlu0 %221, %v212
      %v223 = vpop.permute.xlu0 %222
      %226 = vset.pattern.permute.xlu0 0
      %227 = vperm.xlu0 %226, %v213
      %v228 = vpop.permute.xlu0 %227
      %231 = vset.pattern.permute.xlu0 0
      %232 = vperm.xlu0 %231, %v214
      %v233 = vpop.permute.xlu0 %232
      %v235 = vmul.f32 %v203, %v218
      %v236 = vmul.f32 %v204, %v218
      %v237 = vmul.f32 %v205, %v223
      %v238 = vmul.f32 %v206, %v223
      %v239 = vmul.f32 %v207, %v228
      %v240 = vmul.f32 %v208, %v228
      %v241 = vmul.f32 %v209, %v233
      %v242 = vmul.f32 %v210, %v233
      %243 = vst [vmem:[%s201] sm:$0xff] %v235
      %244 = vst [vmem:[%s201 + $0x8] sm:$0xff] %v236
      %245 = vst [vmem:[%s201 + $0x10] sm:$0xff] %v237
      %246 = vst [vmem:[%s201 + $0x18] sm:$0xff] %v238
      %247 = vst [vmem:[%s201 + $0x20] sm:$0xff] %v239
      %248 = vst [vmem:[%s201 + $0x28] sm:$0xff] %v240
      %249 = vst [vmem:[%s201 + $0x30] sm:$0xff] %v241
      %250 = vst [vmem:[%s201 + $0x38] sm:$0xff] %v242
      %s251 = smul.u32 2, %s18
      %p252 = scmp.lt.s32.totalorder %s17, 1
      %s253 = scalar_select %p252, %s17, 1
      %p254 = scmp.lt.s32.totalorder %s251, 1
      %s255 = scalar_select %p254, %s251, 1
      %s256 = smul.addr %s253, 8
      %s257 = sadd.s32 %s255, %s256
      %s258 = smul.addr %s257, 8
      %s259 = scalar_lea.vmem %s2, %s258
      // Predicated region
      $region29: #{_se_layer_call.1} parent=27 // pred_check
        %p260 = pneg %p99
      $region30: #{_se_layer_call.1} parent=27 // pred_check_branch
        %262 = sbr.rel (%p260) target = $region32
      $region31: #{_se_layer_call.1} parent=27 // pred_region
        %s263 = smul.u32 2, %s18
      $region32: #{_se_layer_call.1} parent=27 // pred_fallthru
        _
    $region28: #{_se_layer_call.1} parent=5 // pred_fallthru
      _
    %p264 = scmp.le.s32.totalorder 2, %s8
    // Predicated region
    $region33: #{_se_layer_call.1} parent=5 // pred_check
      %p265 = pneg %p264
    $region34: #{_se_layer_call.1} parent=5 // pred_check_branch
      %267 = sbr.rel (%p265) target = $region36
    $region35: #{_se_layer_call.1} parent=5 // pred_region
      %s268 = ssub.s32 %s8, 2
      // Predicated region
      $region37: #{_se_layer_call.1} parent=35 // pred_check
        %p269 = pneg %p105
      $region38: #{_se_layer_call.1} parent=35 // pred_check_branch
        %271 = sbr.rel (%p269) target = $region40
      $region39: #{_se_layer_call.1} parent=35 // pred_region
        %s272 = smul.u32 2, %s20
        %p273 = scmp.lt.s32.totalorder %s19, 1
        %s274 = scalar_select %p273, %s19, 1
        %p275 = scmp.lt.s32.totalorder %s272, 1
        %s276 = scalar_select %p275, %s272, 1
        %s277 = smul.addr %s274, 8
        %s278 = sadd.s32 %s276, %s277
        %s279 = smul.addr %s278, 8
        %s280 = scalar_lea.vmem %s2, %s279
      $region40: #{_se_layer_call.1} parent=35 // pred_fallthru
        _
    $region36: #{_se_layer_call.1} parent=5 // pred_fallthru
      _
  $region6: #{_se_layer_call.1} parent=0 // loop_footer
    %s12 = sadd.s32 1, %s8
  $region7: #{_se_layer_call.1} parent=0 // loop_footer_branch
    %7 = sbr.rel target = $region3
  $region8: #{_se_layer_call.1} parent=0 // loop_exit
    _

</llo_original>
